<compile_context>
chip_gen: v7x
topology: tpu7x:2x2x1
jax: 0.10.0
libtpu: 0.0.40
codegen_flags: <defaults>
</compile_context>

<pallas_src>
import jax
import jax.numpy as jnp
from jax.experimental import pallas as pl
from jax.experimental.pallas import tpu as pltpu


def _round_up(x, m):
    return (x + m - 1) // m * m


def _cdiv(a, b):
    return (a + b - 1) // b


_VMEM_LIMIT_BYTES = 48 * 1024 * 1024   # requested scoped VMEM (all generations)
_VMEM_BUDGET_BYTES = 30 * 1024 * 1024  # working-set gate for tile selection


# ---------------------------------------------------------------------------
# Kernels
# ---------------------------------------------------------------------------

def _policy_head_kernel_single(x_ref, w_ref, b_ref, o_ref):
    # Full reduction depth resident: one MXU pass, bias folded into the store.
    o_ref[...] = (jnp.dot(x_ref[...], w_ref[...],
                          preferred_element_type=jnp.float32)
                  + b_ref[...]).astype(o_ref.dtype)


def _policy_head_kernel_multi(x_ref, w_ref, b_ref, o_ref, acc_ref):
    # Reduction (K) axis is the innermost grid dim ("arbitrary").
    # Bias is folded into the accumulator init so the epilogue is cast+store.
    k = pl.program_id(2)

    @pl.when(k == 0)
    def _():
        acc_ref[...] = jnp.broadcast_to(b_ref[...], acc_ref.shape)

    acc_ref[...] += jnp.dot(x_ref[...], w_ref[...],
                            preferred_element_type=jnp.float32)

    @pl.when(k == pl.num_programs(2) - 1)
    def _():
        o_ref[...] = acc_ref[...].astype(o_ref.dtype)


# ---------------------------------------------------------------------------
# Parameter preparation (done once, outside the per-call path)
# ---------------------------------------------------------------------------

def init_params(key, n_embd, n_out=1968):
    """nn.Linear(n_embd, n_out) params, weight stored transposed (n_embd, n_out)."""
    kw, kb = jax.random.split(key)
    bound = 1.0 / jnp.sqrt(n_embd)
    w = jax.random.uniform(kw, (n_embd, n_out), jnp.float32, -bound, bound)
    b = jax.random.uniform(kb, (n_out,), jnp.float32, -bound, bound)
    return {"w": w, "b": b}


def prepare_params(params, *, param_dtype=jnp.bfloat16):
    """Pad + cast the Linear params ONCE into the kernel's layout.

    Weight -> bf16 (d_pad, n_pad) lane-dense slab; bias -> f32 (1, n_pad).
    Reuse the returned dict across every forward call.
    """
    w, b = params["w"], params["b"]
    D, N = w.shape
    d_pad = _round_up(D, 128)
    n_pad = _round_up(N, 128)
    w_p = jnp.zeros((d_pad, n_pad), param_dtype).at[:D, :N].set(
        w.astype(param_dtype))
    b_p = jnp.zeros((1, n_pad), jnp.float32).at[0, :N].set(
        b.astype(jnp.float32))
    return {"w_p": w_p, "b_p": b_p, "n_embd": D, "n_out": N}


# ---------------------------------------------------------------------------
# Pallas wrapper
# ---------------------------------------------------------------------------

def _pick_tn(n_pad, tn_max):
    """Largest 128-multiple divisor of n_pad that is <= tn_max."""
    tn = min(_round_up(max(tn_max, 128), 128), n_pad)
    while n_pad % tn != 0:
        tn -= 128
    return tn


def _est_vmem(tm, tk, tn, multi_k, in_bytes, out_bytes):
    """Double-buffered tile working set (+ f32 accumulator when multi-K)."""
    est = 2 * tm * tk * in_bytes          # x tiles
    est += 2 * tk * tn * in_bytes         # weight tiles
    est += 2 * 1 * tn * 4                 # bias
    est += 2 * tm * tn * out_bytes        # output tiles
    if multi_k:
        est += tm * tn * 4                # accumulator scratch
    return est


def policy_head_pallas(x2d, w_p, b_p, *, tm=512, tn=1024,
                       compute_dtype=jnp.bfloat16):
    """x2d: (M, D).  w_p: (d_pad, n_pad) padded bf16.  b_p: (1, n_pad) f32.

    Returns the PADDED (m_pad, n_pad) result; caller slices to (M, n_out).
    """
    M, D = x2d.shape
    d_pad, n_pad = w_p.shape
    assert D <= d_pad

    in_bytes = jnp.dtype(compute_dtype).itemsize
    out_dtype = x2d.dtype
    out_bytes = jnp.dtype(out_dtype).itemsize

    # Balanced row tile: minimizes padded rows for awkward M (e.g. M=300).
    tm_eff = _round_up(_cdiv(M, _cdiv(M, tm)), 8)
    m_pad = _round_up(M, tm_eff)

    tn_eff = _pick_tn(n_pad, tn)

    # Prefer a single reduction step (no K axis / accumulator) when it fits.
    if _est_vmem(tm_eff, d_pad, tn_eff, False, in_bytes, out_bytes) <= _VMEM_BUDGET_BYTES:
        tk = d_pad
    else:
        tk = 128
        t = d_pad - 128
        while t >= 256:
            if (d_pad % t == 0 and
                    _est_vmem(tm_eff, t, tn_eff, True, in_bytes, out_bytes)
                    <= _VMEM_BUDGET_BYTES):
                tk = t
                break
            t -= 128
    n_k = d_pad // tk

    # Pad/cast the activation only when actually needed.
    if (m_pad != M) or (d_pad != D):
        x_p = jnp.zeros((m_pad, d_pad), compute_dtype).at[:M, :D].set(
            x2d.astype(compute_dtype))
    elif x2d.dtype != compute_dtype:
        x_p = x2d.astype(compute_dtype)
    else:
        x_p = x2d

    m_tiles = m_pad // tm_eff
    n_tiles = n_pad // tn_eff

    if n_k == 1:
        kernel = _policy_head_kernel_single
        grid = (m_tiles, n_tiles)
        in_specs = [
            pl.BlockSpec((tm_eff, d_pad), lambda i, j: (i, 0)),   # x tile
            pl.BlockSpec((d_pad, tn_eff), lambda i, j: (0, j)),   # weight slab
            pl.BlockSpec((1, tn_eff), lambda i, j: (0, j)),       # bias
        ]
        out_specs = pl.BlockSpec((tm_eff, tn_eff), lambda i, j: (i, j))
        scratch_shapes = []
        semantics = ("parallel", "parallel")
    else:
        kernel = _policy_head_kernel_multi
        grid = (m_tiles, n_tiles, n_k)
        in_specs = [
            pl.BlockSpec((tm_eff, tk), lambda i, j, k: (i, k)),
            pl.BlockSpec((tk, tn_eff), lambda i, j, k: (k, j)),
            pl.BlockSpec((1, tn_eff), lambda i, j, k: (0, j)),
        ]
        out_specs = pl.BlockSpec((tm_eff, tn_eff), lambda i, j, k: (i, j))
        scratch_shapes = [pltpu.VMEM((tm_eff, tn_eff), jnp.float32)]
        semantics = ("parallel", "parallel", "arbitrary")

    out = pl.pallas_call(
        kernel,
        out_shape=jax.ShapeDtypeStruct((m_pad, n_pad), out_dtype),
        grid_spec=pltpu.PrefetchScalarGridSpec(
            num_scalar_prefetch=0,
            grid=grid,
            in_specs=in_specs,
            out_specs=out_specs,
            scratch_shapes=scratch_shapes,
        ),
        compiler_params=pltpu.CompilerParams(
            dimension_semantics=semantics,
            vmem_limit_bytes=_VMEM_LIMIT_BYTES,
        ),
    )(x_p, w_p, b_p)

    return out


def policy_head_forward(x, prepared, *, tm=512, tn=1024):
    """x: (..., n_embd).  `prepared` comes from prepare_params().  -> (..., 1968)."""
    # TODO(synk): the PyTorch forward's debug print of x.shape and the unused
    # masked_softmax helper (data-dependent ragged masking) are omitted.
    lead = x.shape[:-1]
    D = x.shape[-1]
    assert D == prepared["n_embd"]
    x2d = x.reshape(-1, D)
    M = x2d.shape[0]
    N = prepared["n_out"]
    y = policy_head_pallas(x2d, prepared["w_p"], prepared["b_p"], tm=tm, tn=tn)
    return y[:M, :N].reshape(*lead, N)


if __name__ == "__main__":
    B, T, n_embd = 2, 8, 32

    key = jax.random.PRNGKey(0)
    kx, kp = jax.random.split(key)
    x = jax.random.normal(kx, (B, T, n_embd), jnp.float32)
    params = init_params(kp, n_embd)
    prepared = prepare_params(params)          # pad + cast once, reused per call

    out = policy_head_forward(x, prepared)
    out = jax.block_until_ready(out)

    # Pure-JAX f32 reference: y = x @ W + b.
    ref = (x.reshape(-1, n_embd) @ params["w"] + params["b"]).reshape(B, T, -1)
    ref = jax.block_until_ready(ref)

    assert out.shape == (B, T, 1968), out.shape
    # bf16 matmul inputs (f32 accumulation) -> loosened tolerance vs f32 ref.
    assert jnp.allclose(out, ref, atol=5e-2, rtol=5e-2), (
        float(jnp.max(jnp.abs(out - ref))))

    print("KERNEL_OK")
</pallas_src>

<mosaic_0001>
module attributes {stable_mosaic.version = 11 : i64} {
  func.func @_policy_head_kernel_single(%arg0: i32, %arg1: i32, %arg2: memref<16x128xbf16, #tpu.memory_space<vmem>>, %arg3: memref<128x1024xbf16, #tpu.memory_space<vmem>>, %arg4: memref<1x1024xf32, #tpu.memory_space<vmem>>, %arg5: memref<16x1024xf32, #tpu.memory_space<vmem>>) attributes {dimension_semantics = [#tpu.dimension_semantics<parallel>, #tpu.dimension_semantics<parallel>], iteration_bounds = array<i64: 1, 2>, scalar_prefetch = 0 : i64, scratch_operands = 0 : i64, tpu.core_type = #tpu.core_type<tc>, window_params = [{transform_indices = @transform_0, window_bounds = array<i64: 16, 128>}, {transform_indices = @transform_1, window_bounds = array<i64: 128, 1024>}, {transform_indices = @transform_2, window_bounds = array<i64: 1, 1024>}, {transform_indices = @transform_3, window_bounds = array<i64: 16, 1024>}]} {
    %c0 = arith.constant 0 : index
    %c0_0 = arith.constant 0 : index
    %0 = vector.load %arg2[%c0, %c0_0] : memref<16x128xbf16, #tpu.memory_space<vmem>>, vector<16x128xbf16>
    %c0_1 = arith.constant 0 : index
    %c0_2 = arith.constant 0 : index
    %1 = vector.load %arg3[%c0_1, %c0_2] : memref<128x1024xbf16, #tpu.memory_space<vmem>>, vector<128x1024xbf16>
    %cst = arith.constant dense<0.000000e+00> : vector<16x1024xf32>
    %2 = tpu.matmul %0, %1, %cst {dimension_numbers = #tpu.dot_dimension_numbers<[1], [0], [0], [1], [0, 0, 1, 1], [], []>} : vector<16x128xbf16>, vector<128x1024xbf16>, vector<16x1024xf32> -> vector<16x1024xf32>
    %c0_3 = arith.constant 0 : index
    %c0_4 = arith.constant 0 : index
    %3 = vector.load %arg4[%c0_3, %c0_4] : memref<1x1024xf32, #tpu.memory_space<vmem>>, vector<1x1024xf32>
    %4 = vector.broadcast %3 : vector<1x1024xf32> to vector<16x1024xf32>
    %5 = arith.addf %2, %4 : vector<16x1024xf32>
    %c0_5 = arith.constant 0 : index
    %c0_6 = arith.constant 0 : index
    %6 = vector.load %arg5[%c0_5, %c0_6] : memref<16x1024xf32, #tpu.memory_space<vmem>>, vector<16x1024xf32>
    tpu.vector_store %arg5[%c0_5, %c0_6], %5 {strides = array<i32>} : memref<16x1024xf32, #tpu.memory_space<vmem>>, vector<16x1024xf32>,
    return
  }
  func.func @transform_0(%arg0: i32, %arg1: i32) -> (i32, i32) {
    %c0_i32 = arith.constant 0 : i32
    %c0_i32_0 = arith.constant 0 : i32
    return %arg0, %c0_i32 : i32, i32
  }
  func.func @transform_1(%arg0: i32, %arg1: i32) -> (i32, i32) {
    %c0_i32 = arith.constant 0 : i32
    %c0_i32_0 = arith.constant 0 : i32
    return %c0_i32, %arg1 : i32, i32
  }
  func.func @transform_2(%arg0: i32, %arg1: i32) -> (i32, i32) {
    %c0_i32 = arith.constant 0 : i32
    %c0_i32_0 = arith.constant 0 : i32
    return %c0_i32, %arg1 : i32, i32
  }
  func.func @transform_3(%arg0: i32, %arg1: i32) -> (i32, i32) {
    %c0_i32 = arith.constant 0 : i32
    return %arg0, %arg1 : i32, i32
  }
}

</mosaic_0001>

<llo_original>
// kernel: tpu_custom_call.1
$region0: #{tpu_custom_call.1}
  #allocation0 [shape = 'u32[]', space=smem, size = 0x4, offset = 0x4, fixed_abs, tag = 'smem constant byte address 0x4 - core index']
  #allocation1 [shape = 'u32[144,128]{1,0:T(1,128)}', space=vmem, size = 0x12000, scoped, tag = 'internal scratch']
  %s0 = inlined_call_operand.hbm [shape: bf16[16,128], index: 0, kind: input, shape index: {}]
  %s1 = inlined_call_operand.hbm [shape: bf16[128,2048], index: 1, kind: input, shape index: {}]
  %s2 = inlined_call_operand.hbm [shape: f32[1,2048], index: 2, kind: input, shape index: {}]
  %s3 = inlined_call_operand.hbm [shape: f32[16,2048], index: 3, kind: output, shape index: {}]
  %s4 = sld [smem:[#allocation0]]
  $region57: #{tpu_custom_call.1} parent=0
    _
  %s6 = ssub.s32 1, %s4
  %s7 = scalar_select 0, %s6, %s4
  $region1: #{tpu_custom_call.1} parent=0
    #allocation2 [shape = 'u8[4096]{0}', space=vmem, size = 0x1000, scoped, tag = 'input window, operand 0, single buffered']
    #allocation3 [shape = 's32[2]{0}', space=sflag, size = 0x8, scoped, tag = 'scoped memory for tpu_custom_call.1']
    #allocation4 [shape = 's32[2]{0}', space=sflag, size = 0x8, scoped, tag = 'scoped memory for tpu_custom_call.1']
    #allocation5 [shape = 'u8[524288]{0}', space=vmem, size = 0x80000, scoped, tag = 'input window, operand 1']
    #allocation6 [shape = 's32[2]{0}', space=sflag, size = 0x8, scoped, tag = 'scoped memory for tpu_custom_call.1']
    #allocation7 [shape = 'u8[8192]{0}', space=vmem, size = 0x2000, scoped, tag = 'input window, operand 2']
    #allocation8 [shape = 'u8[131072]{0}', space=vmem, size = 0x20000, scoped, tag = 'output window, operand 0']
    %8 = vsyncpa [#allocation3], 0
    %9 = vsyncpa [#allocation6], 0
    %s10 = scalar_lea.sflag [#allocation6], 1
    %11 = vsyncpa %s10, 0
    %12 = vsyncpa [#allocation4], 0
    %s13 = scalar_lea.sflag [#allocation4], 1
    %14 = vsyncpa %s13, 0
    loop: start=0, step=1, limit=4
    $region2: #{tpu_custom_call.1} parent=1 // loop_pre_header
      _
    $region3: #{tpu_custom_call.1} parent=1 // loop_header
      %s16 = sphi 0, %s20
      %p17 = scmp.ge.s32.totalorder %s16, 4
      %s23 = sphi 0, %s35
      %s24 = sphi 0, %s31
      %s25 = sphi 0, %s23
      %s26 = sphi 0, %s24
      %s27 = sphi 0, %s25
      %s28 = sphi 0, %s26
      %s38 = sphi 0, %s40
      %s41 = sphi 0, %s38
      %s42 = sphi 0, %s41
      %s58 = sphi 0, %s42
      %s64 = sphi 0, %s66
      %s67 = sphi 0, %s64
      %s68 = sphi 0, %s67
      %s84 = sphi 0, %s68
      %s90 = sphi 0, %s92
      %s93 = sphi 0, %s90
      %s94 = sphi 0, %s93
      %s110 = sphi 0, %s94
      %s118 = sphi 0, %s120
      %s121 = sphi 0, %s118
      %s122 = sphi 0, %s121
      %s138 = sphi 0, %s122
    $region4: #{tpu_custom_call.1} parent=1 // loop_header_branch
      %19 = sbr.rel (%p17) target = $region8
    $region5: #{tpu_custom_call.1} parent=1 // loop_body
      %s21 = ssub.s32 %s16, 1
      %s22 = ssub.s32 %s16, 2
      %s29 = sadd.s32 1, %s24
      %p30 = scmp.ge.s32.totalorder %s29, 2
      %s31 = scalar_select %p30, 0, %s29
      %s32 = sadd.s32 1, %s23
      %s33 = scalar_select %p30, %s32, %s23
      %p34 = scmp.ge.s32.totalorder %s33, 1
      %s35 = scalar_select %p34, 0, %s33
      %s36 = ssub.s32 %s23, %s35
      %p37 = scmp.eq.s32.totalorder %s36, 0
      %s39 = sadd.s32 %s38, 1
      %s40 = scalar_select %p37, %s38, %s39
      %p43 = pneg %p37
      %p44 = scmp.eq.s32.totalorder %s16, 1
      %p45 = por %p43, %p44
      %p46 = scmp.ne.s32.totalorder %s38, %s41
      %p47 = scmp.eq.s32.totalorder %s16, 0
      %p48 = por %p46, %p47
      %p49 = scmp.ne.s32.totalorder %s38, %s41
      %p50 = scmp.eq.s32.totalorder %s21, 1
      %p51 = por %p49, %p50
      %p52 = scmp.ne.s32.totalorder %s41, %s42
      %p53 = scmp.eq.s32.totalorder %s21, 0
      %p54 = por %p52, %p53
      %p55 = scmp.ne.s32.totalorder %s41, %s42
      %p56 = scmp.eq.s32.totalorder %s22, 1
      %p57 = por %p55, %p56
      %p59 = scmp.ne.s32.totalorder %s42, %s58
      %p60 = scmp.eq.s32.totalorder %s22, 0
      %p61 = por %p59, %p60
      %s62 = ssub.s32 %s24, %s31
      %p63 = scmp.eq.s32.totalorder %s62, 0
      %s65 = sadd.s32 %s64, 1
      %s66 = scalar_select %p63, %s64, %s65
      %p69 = pneg %p63
      %p70 = scmp.eq.s32.totalorder %s16, 1
      %p71 = por %p69, %p70
      %p72 = scmp.ne.s32.totalorder %s64, %s67
      %p73 = scmp.eq.s32.totalorder %s16, 0
      %p74 = por %p72, %p73
      %p75 = scmp.ne.s32.totalorder %s64, %s67
      %p76 = scmp.eq.s32.totalorder %s21, 1
      %p77 = por %p75, %p76
      %p78 = scmp.ne.s32.totalorder %s67, %s68
      %p79 = scmp.eq.s32.totalorder %s21, 0
      %p80 = por %p78, %p79
      %p81 = scmp.ne.s32.totalorder %s67, %s68
      %p82 = scmp.eq.s32.totalorder %s22, 1
      %p83 = por %p81, %p82
      %p85 = scmp.ne.s32.totalorder %s68, %s84
      %p86 = scmp.eq.s32.totalorder %s22, 0
      %p87 = por %p85, %p86
      %s88 = ssub.s32 %s24, %s31
      %p89 = scmp.eq.s32.totalorder %s88, 0
      %s91 = sadd.s32 %s90, 1
      %s92 = scalar_select %p89, %s90, %s91
      %p95 = pneg %p89
      %p96 = scmp.eq.s32.totalorder %s16, 1
      %p97 = por %p95, %p96
      %p98 = scmp.ne.s32.totalorder %s90, %s93
      %p99 = scmp.eq.s32.totalorder %s16, 0
      %p100 = por %p98, %p99
      %p101 = scmp.ne.s32.totalorder %s90, %s93
      %p102 = scmp.eq.s32.totalorder %s21, 1
      %p103 = por %p101, %p102
      %p104 = scmp.ne.s32.totalorder %s93, %s94
      %p105 = scmp.eq.s32.totalorder %s21, 0
      %p106 = por %p104, %p105
      %p107 = scmp.ne.s32.totalorder %s93, %s94
      %p108 = scmp.eq.s32.totalorder %s22, 1
      %p109 = por %p107, %p108
      %p111 = scmp.ne.s32.totalorder %s94, %s110
      %p112 = scmp.eq.s32.totalorder %s22, 0
      %p113 = por %p111, %p112
      %s114 = ssub.s32 %s23, %s35
      %s115 = ssub.s32 %s24, %s31
      %s116 = sor.u32 %s114, %s115
      %p117 = scmp.eq.s32.totalorder %s116, 0
      %s119 = sadd.s32 %s118, 1
      %s120 = scalar_select %p117, %s118, %s119
      %p123 = pneg %p117
      %p124 = scmp.eq.s32.totalorder %s16, 1
      %p125 = por %p123, %p124
      %p126 = scmp.ne.s32.totalorder %s118, %s121
      %p127 = scmp.eq.s32.totalorder %s16, 0
      %p128 = por %p126, %p127
      %p129 = scmp.ne.s32.totalorder %s118, %s121
      %p130 = scmp.eq.s32.totalorder %s21, 1
      %p131 = por %p129, %p130
      %p132 = scmp.ne.s32.totalorder %s121, %s122
      %p133 = scmp.eq.s32.totalorder %s21, 0
      %p134 = por %p132, %p133
      %p135 = scmp.ne.s32.totalorder %s121, %s122
      %p136 = scmp.eq.s32.totalorder %s22, 1
      %p137 = por %p135, %p136
      %p139 = scmp.ne.s32.totalorder %s122, %s138
      %p140 = scmp.eq.s32.totalorder %s22, 0
      %p141 = por %p139, %p140
      %p142 = scmp.le.s32.totalorder 1, %s16
      %p143 = scmp.lt.s32.totalorder %s16, 3
      %p144 = pnand %p142, %p143
      %p145 = pneg %p144
      // Predicated region
      $region9: #{tpu_custom_call.1} parent=5 // pred_check
        _
      $region10: #{tpu_custom_call.1} parent=5 // pred_check_branch
        %147 = sbr.rel (%p144) target = $region12
      $region11: #{tpu_custom_call.1} parent=5 // pred_region
        %s148 = ssub.s32 %s16, 1
        // Predicated region
        $region13: #{tpu_custom_call.1} parent=11 // pred_check
          %p149 = pneg %p54
        $region14: #{tpu_custom_call.1} parent=11 // pred_check_branch
          %151 = sbr.rel (%p149) target = $region16
        $region15: #{tpu_custom_call.1} parent=11 // pred_region
          %s152 = smul.u32 2, %s25
          %s154 = ssub.s32 128, 128
          %155 = vsyncadd [#allocation3], %s154
          %s156 = smul.addr %s152, 64
          %s157 = scalar_lea.hbm %s0, %s156
          %s158 = sshll.u32 [#allocation2], 4
          %s159 = int_to_ptr.vmem [resolvable:$true] %s158
          %164 = dma.hbm_to_vmem [thread:$0]  %s157, 128, %s159, [#allocation3], 64, 64, 4
        $region16: #{tpu_custom_call.1} parent=11 // pred_fallthru
          _
      $region12: #{tpu_custom_call.1} parent=5 // pred_fallthru
        _
      %p165 = scmp.lt.s32.totalorder %s16, 2
      // Predicated region
      $region17: #{tpu_custom_call.1} parent=5 // pred_check
        %p166 = pneg %p165
      $region18: #{tpu_custom_call.1} parent=5 // pred_check_branch
        %168 = sbr.rel (%p166) target = $region20
      $region19: #{tpu_custom_call.1} parent=5 // pred_region
        // Predicated region
        $region21: #{tpu_custom_call.1} parent=19 // pred_check
          %p169 = pneg %p74
        $region22: #{tpu_custom_call.1} parent=19 // pred_check_branch
          %171 = sbr.rel (%p169) target = $region24
        $region23: #{tpu_custom_call.1} parent=19 // pred_region
          %s172 = sand.u32 %s16, 1
          %s173 = scalar_lea.sflag [#allocation6], %s172
          %s174 = sand.u32 %s64, 1
          %s175 = smul.addr %s174, 512
          %s176 = scalar_lea.vmem [#allocation5], %s175
          %s177 = smul.u32 8, %s24
          %s179 = ssub.s32 8192, 8192
          %180 = vsyncadd %s173, %s179
          %s181 = smul.addr %s177, 64
          %s182 = scalar_lea.hbm %s1, %s181
          %s183 = sshll.u32 %s176, 4
          %s184 = int_to_ptr.vmem [resolvable:$true] %s183
          %189 = dma.hbm_to_vmem [thread:$0]  %s182, 8192, %s184, %s173, 1024, 512, 32
        $region24: #{tpu_custom_call.1} parent=19 // pred_fallthru
          _
        // Predicated region
        $region25: #{tpu_custom_call.1} parent=19 // pred_check
          %p190 = pneg %p100
        $region26: #{tpu_custom_call.1} parent=19 // pred_check_branch
          %192 = sbr.rel (%p190) target = $region28
        $region27: #{tpu_custom_call.1} parent=19 // pred_region
          %s193 = sand.u32 %s16, 1
          %s194 = scalar_lea.sflag [#allocation6], %s193
          %s195 = sand.u32 %s90, 1
          %s196 = smul.addr %s195, 8
          %s197 = scalar_lea.vmem [#allocation7], %s196
          %s198 = smul.u32 8, %s24
          %s200 = ssub.s32 128, 128
          %201 = vsyncadd %s194, %s200
          %s202 = smul.addr %s198, 16
          %s203 = scalar_lea.hbm %s2, %s202
          %s205 = sshll.u32 %s197, 4
          %s206 = int_to_ptr.vmem [resolvable:$true] %s205
          %208 = dma.hbm_to_vmem [thread:$0]  %s203, 128, %s206, %s194
        $region28: #{tpu_custom_call.1} parent=19 // pred_fallthru
          _
      $region20: #{tpu_custom_call.1} parent=5 // pred_fallthru
        _
      %p209 = scmp.le.s32.totalorder 1, %s16
      %p210 = scmp.lt.s32.totalorder %s16, 3
      %p211 = pnand %p209, %p210
      %p212 = pneg %p211
      // Predicated region
      $region29: #{tpu_custom_call.1} parent=5 // pred_check
        _
      $region30: #{tpu_custom_call.1} parent=5 // pred_check_branch
        %214 = sbr.rel (%p211) target = $region32
      $region31: #{tpu_custom_call.1} parent=5 // pred_region
        %s215 = ssub.s32 %s16, 1
        // Predicated region
        $region33: #{tpu_custom_call.1} parent=31 // pred_check
          %p216 = pneg %p54
        $region34: #{tpu_custom_call.1} parent=31 // pred_check_branch
          %218 = sbr.rel (%p216) target = $region36
        $region35: #{tpu_custom_call.1} parent=31 // pred_region
          %219 = dma.done [#allocation3], 128
        $region36: #{tpu_custom_call.1} parent=31 // pred_fallthru
          _
        %s220 = sand.u32 %s21, 1
        %s221 = scalar_lea.sflag [#allocation6], %s220
        %s222 = sand.u32 %s67, 1
        %s223 = smul.addr %s222, 512
        %s224 = scalar_lea.vmem [#allocation5], %s223
        // Predicated region
        $region37: #{tpu_custom_call.1} parent=31 // pred_check
          %p225 = pneg %p80
        $region38: #{tpu_custom_call.1} parent=31 // pred_check_branch
          %227 = sbr.rel (%p225) target = $region40
        $region39: #{tpu_custom_call.1} parent=31 // pred_region
          %228 = dma.done %s221, 8192
        $region40: #{tpu_custom_call.1} parent=31 // pred_fallthru
          _
        %s229 = sand.u32 %s21, 1
        %s230 = scalar_lea.sflag [#allocation6], %s229
        %s231 = sand.u32 %s93, 1
        %s232 = smul.addr %s231, 8
        %s233 = scalar_lea.vmem [#allocation7], %s232
        // Predicated region
        $region41: #{tpu_custom_call.1} parent=31 // pred_check
          %p234 = pneg %p106
        $region42: #{tpu_custom_call.1} parent=31 // pred_check_branch
          %236 = sbr.rel (%p234) target = $region44
        $region43: #{tpu_custom_call.1} parent=31 // pred_region
          %237 = dma.done %s230, 128
        $region44: #{tpu_custom_call.1} parent=31 // pred_fallthru
          _
        %p238 = pneg %p54
        %p239 = pneg %p51
        %s240 = sand.u32 %s21, 1
        %s241 = scalar_lea.sflag [#allocation6], %s240
        %s242 = sand.u32 %s67, 1
        %s243 = smul.addr %s242, 512
        %s244 = scalar_lea.vmem [#allocation5], %s243
        %p245 = pneg %p80
        %p246 = pneg %p77
        %s247 = sand.u32 %s21, 1
        %s248 = scalar_lea.sflag [#allocation6], %s247
        %s249 = sand.u32 %s93, 1
        %s250 = smul.addr %s249, 8
        %s251 = scalar_lea.vmem [#allocation7], %s250
        %p252 = pneg %p106
        %p253 = pneg %p103
        %p254 = pneg %p134
        %p255 = pneg %p131
        %s256 = sand.u32 %s121, 1
        %s257 = scalar_lea.sflag [#allocation4], %s256
        %s258 = sand.u32 %s121, 1
        %s259 = smul.addr %s258, 128
        %s260 = scalar_lea.vmem [#allocation8], %s259
        %s261 = smul.u32 2, %s25
        %s262 = smul.u32 8, %s26
        %s263 = smul.u32 8, %s26
        %s264 = smul.u32 2, %s25
        %s265 = smul.u32 8, %s26
        %v267 = vld [vmem:[#allocation2] sm:$0xf]
        %v268 = vld [vmem:[#allocation2 + $0x4] sm:$0xf]
        %v269 = vld [vmem:[%s224] sm:$0xff]
        %v270 = vld [vmem:[%s224 + $0x8] sm:$0xff]
        %v271 = vld [vmem:[%s224 + $0x10] sm:$0xff]
        %v272 = vld [vmem:[%s224 + $0x18] sm:$0xff]
        %v273 = vld [vmem:[%s224 + $0x20] sm:$0xff]
        %v274 = vld [vmem:[%s224 + $0x28] sm:$0xff]
        %v275 = vld [vmem:[%s224 + $0x30] sm:$0xff]
        %v276 = vld [vmem:[%s224 + $0x38] sm:$0xff]
        %v277 = vld [vmem:[%s224 + $0x40] sm:$0xff]
        %v278 = vld [vmem:[%s224 + $0x48] sm:$0xff]
        %v279 = vld [vmem:[%s224 + $0x50] sm:$0xff]
        %v280 = vld [vmem:[%s224 + $0x58] sm:$0xff]
        %v281 = vld [vmem:[%s224 + $0x60] sm:$0xff]
        %v282 = vld [vmem:[%s224 + $0x68] sm:$0xff]
        %v283 = vld [vmem:[%s224 + $0x70] sm:$0xff]
        %v284 = vld [vmem:[%s224 + $0x78] sm:$0xff]
        %v285 = vld [vmem:[%s224 + $0x80] sm:$0xff]
        %v286 = vld [vmem:[%s224 + $0x88] sm:$0xff]
        %v287 = vld [vmem:[%s224 + $0x90] sm:$0xff]
        %v288 = vld [vmem:[%s224 + $0x98] sm:$0xff]
        %v289 = vld [vmem:[%s224 + $0xa0] sm:$0xff]
        %v290 = vld [vmem:[%s224 + $0xa8] sm:$0xff]
        %v291 = vld [vmem:[%s224 + $0xb0] sm:$0xff]
        %v292 = vld [vmem:[%s224 + $0xb8] sm:$0xff]
        %v293 = vld [vmem:[%s224 + $0xc0] sm:$0xff]
        %v294 = vld [vmem:[%s224 + $0xc8] sm:$0xff]
        %v295 = vld [vmem:[%s224 + $0xd0] sm:$0xff]
        %v296 = vld [vmem:[%s224 + $0xd8] sm:$0xff]
        %v297 = vld [vmem:[%s224 + $0xe0] sm:$0xff]
        %v298 = vld [vmem:[%s224 + $0xe8] sm:$0xff]
        %v299 = vld [vmem:[%s224 + $0xf0] sm:$0xff]
        %v300 = vld [vmem:[%s224 + $0xf8] sm:$0xff]
        %v301 = vld [vmem:[%s224 + $0x100] sm:$0xff]
        %v302 = vld [vmem:[%s224 + $0x108] sm:$0xff]
        %v303 = vld [vmem:[%s224 + $0x110] sm:$0xff]
        %v304 = vld [vmem:[%s224 + $0x118] sm:$0xff]
        %v305 = vld [vmem:[%s224 + $0x120] sm:$0xff]
        %v306 = vld [vmem:[%s224 + $0x128] sm:$0xff]
        %v307 = vld [vmem:[%s224 + $0x130] sm:$0xff]
        %v308 = vld [vmem:[%s224 + $0x138] sm:$0xff]
        %v309 = vld [vmem:[%s224 + $0x140] sm:$0xff]
        %v310 = vld [vmem:[%s224 + $0x148] sm:$0xff]
        %v311 = vld [vmem:[%s224 + $0x150] sm:$0xff]
        %v312 = vld [vmem:[%s224 + $0x158] sm:$0xff]
        %v313 = vld [vmem:[%s224 + $0x160] sm:$0xff]
        %v314 = vld [vmem:[%s224 + $0x168] sm:$0xff]
        %v315 = vld [vmem:[%s224 + $0x170] sm:$0xff]
        %v316 = vld [vmem:[%s224 + $0x178] sm:$0xff]
        %v317 = vld [vmem:[%s224 + $0x180] sm:$0xff]
        %v318 = vld [vmem:[%s224 + $0x188] sm:$0xff]
        %v319 = vld [vmem:[%s224 + $0x190] sm:$0xff]
        %v320 = vld [vmem:[%s224 + $0x198] sm:$0xff]
        %v321 = vld [vmem:[%s224 + $0x1a0] sm:$0xff]
        %v322 = vld [vmem:[%s224 + $0x1a8] sm:$0xff]
        %v323 = vld [vmem:[%s224 + $0x1b0] sm:$0xff]
        %v324 = vld [vmem:[%s224 + $0x1b8] sm:$0xff]
        %v325 = vld [vmem:[%s224 + $0x1c0] sm:$0xff]
        %v326 = vld [vmem:[%s224 + $0x1c8] sm:$0xff]
        %v327 = vld [vmem:[%s224 + $0x1d0] sm:$0xff]
        %v328 = vld [vmem:[%s224 + $0x1d8] sm:$0xff]
        %v329 = vld [vmem:[%s224 + $0x1e0] sm:$0xff]
        %v330 = vld [vmem:[%s224 + $0x1e8] sm:$0xff]
        %v331 = vld [vmem:[%s224 + $0x1f0] sm:$0xff]
        %v332 = vld [vmem:[%s224 + $0x1f8] sm:$0xff]
        %v333 = vld [vmem:[%s233] sm:$0xff]
        %v335 = vlaneseq
        %v336 = vshrl.u32 %v335, 7
        %v337 = vsub.s32 0, %v336
        %v338 = vrot.slane %v333, %v337
        %v339 = vlaneseq
        %v340 = vshrl.u32 %v339, 7
        %v341 = vsub.s32 1, %v340
        %v342 = vrot.slane %v333, %v341
        %v343 = vlaneseq
        %v344 = vshrl.u32 %v343, 7
        %v345 = vsub.s32 2, %v344
        %v346 = vrot.slane %v333, %v345
        %v347 = vlaneseq
        %v348 = vshrl.u32 %v347, 7
        %v349 = vsub.s32 3, %v348
        %v350 = vrot.slane %v333, %v349
        %v351 = vlaneseq
        %v352 = vshrl.u32 %v351, 7
        %v353 = vsub.s32 4, %v352
        %v354 = vrot.slane %v333, %v353
        %v355 = vlaneseq
        %v356 = vshrl.u32 %v355, 7
        %v357 = vsub.s32 5, %v356
        %v358 = vrot.slane %v333, %v357
        %v359 = vlaneseq
        %v360 = vshrl.u32 %v359, 7
        %v361 = vsub.s32 6, %v360
        %v362 = vrot.slane %v333, %v361
        %v363 = vlaneseq
        %v364 = vshrl.u32 %v363, 7
        %v365 = vsub.s32 7, %v364
        %v366 = vrot.slane %v333, %v365
        %v377 = vunpack.c.l.b16 %v267
        %v378 = vunpack.c.l.b16 %v268
        %v379 = vpack.c.b16 %v378, %v377
        %v445 = vunpack.c.l.b16 %v269
        %v446 = vunpack.c.h.b16 %v269
        %v447 = vunpack.c.l.b16 %v270
        %v448 = vunpack.c.h.b16 %v270
        %v449 = vunpack.c.l.b16 %v271
        %v450 = vunpack.c.h.b16 %v271
        %v451 = vunpack.c.l.b16 %v272
        %v452 = vunpack.c.h.b16 %v272
        %v453 = vunpack.c.l.b16 %v273
        %v454 = vunpack.c.h.b16 %v273
        %v455 = vunpack.c.l.b16 %v274
        %v456 = vunpack.c.h.b16 %v274
        %v457 = vunpack.c.l.b16 %v275
        %v458 = vunpack.c.h.b16 %v275
        %v459 = vunpack.c.l.b16 %v276
        %v460 = vunpack.c.h.b16 %v276
        %v461 = vunpack.c.l.b16 %v277
        %v462 = vunpack.c.h.b16 %v277
        %v463 = vunpack.c.l.b16 %v278
        %v464 = vunpack.c.h.b16 %v278
        %v465 = vunpack.c.l.b16 %v279
        %v466 = vunpack.c.h.b16 %v279
        %v467 = vunpack.c.l.b16 %v280
        %v468 = vunpack.c.h.b16 %v280
        %v469 = vunpack.c.l.b16 %v281
        %v470 = vunpack.c.h.b16 %v281
        %v471 = vunpack.c.l.b16 %v282
        %v472 = vunpack.c.h.b16 %v282
        %v473 = vunpack.c.l.b16 %v283
        %v474 = vunpack.c.h.b16 %v283
        %v475 = vunpack.c.l.b16 %v284
        %v476 = vunpack.c.h.b16 %v284
        %v477 = vunpack.c.l.b16 %v285
        %v478 = vunpack.c.h.b16 %v285
        %v479 = vunpack.c.l.b16 %v286
        %v480 = vunpack.c.h.b16 %v286
        %v481 = vunpack.c.l.b16 %v287
        %v482 = vunpack.c.h.b16 %v287
        %v483 = vunpack.c.l.b16 %v288
        %v484 = vunpack.c.h.b16 %v288
        %v485 = vunpack.c.l.b16 %v289
        %v486 = vunpack.c.h.b16 %v289
        %v487 = vunpack.c.l.b16 %v290
        %v488 = vunpack.c.h.b16 %v290
        %v489 = vunpack.c.l.b16 %v291
        %v490 = vunpack.c.h.b16 %v291
        %v491 = vunpack.c.l.b16 %v292
        %v492 = vunpack.c.h.b16 %v292
        %v493 = vunpack.c.l.b16 %v293
        %v494 = vunpack.c.h.b16 %v293
        %v495 = vunpack.c.l.b16 %v294
        %v496 = vunpack.c.h.b16 %v294
        %v497 = vunpack.c.l.b16 %v295
        %v498 = vunpack.c.h.b16 %v295
        %v499 = vunpack.c.l.b16 %v296
        %v500 = vunpack.c.h.b16 %v296
        %v501 = vunpack.c.l.b16 %v297
        %v502 = vunpack.c.h.b16 %v297
        %v503 = vunpack.c.l.b16 %v298
        %v504 = vunpack.c.h.b16 %v298
        %v505 = vunpack.c.l.b16 %v299
        %v506 = vunpack.c.h.b16 %v299
        %v507 = vunpack.c.l.b16 %v300
        %v508 = vunpack.c.h.b16 %v300
        %v509 = vunpack.c.l.b16 %v301
        %v510 = vunpack.c.h.b16 %v301
        %v511 = vunpack.c.l.b16 %v302
        %v512 = vunpack.c.h.b16 %v302
        %v513 = vunpack.c.l.b16 %v303
        %v514 = vunpack.c.h.b16 %v303
        %v515 = vunpack.c.l.b16 %v304
        %v516 = vunpack.c.h.b16 %v304
        %v517 = vunpack.c.l.b16 %v305
        %v518 = vunpack.c.h.b16 %v305
        %v519 = vunpack.c.l.b16 %v306
        %v520 = vunpack.c.h.b16 %v306
        %v521 = vunpack.c.l.b16 %v307
        %v522 = vunpack.c.h.b16 %v307
        %v523 = vunpack.c.l.b16 %v308
        %v524 = vunpack.c.h.b16 %v308
        %v525 = vunpack.c.l.b16 %v309
        %v526 = vunpack.c.h.b16 %v309
        %v527 = vunpack.c.l.b16 %v310
        %v528 = vunpack.c.h.b16 %v310
        %v529 = vunpack.c.l.b16 %v311
        %v530 = vunpack.c.h.b16 %v311
        %v531 = vunpack.c.l.b16 %v312
        %v532 = vunpack.c.h.b16 %v312
        %v533 = vunpack.c.l.b16 %v313
        %v534 = vunpack.c.h.b16 %v313
        %v535 = vunpack.c.l.b16 %v314
        %v536 = vunpack.c.h.b16 %v314
        %v537 = vunpack.c.l.b16 %v315
        %v538 = vunpack.c.h.b16 %v315
        %v539 = vunpack.c.l.b16 %v316
        %v540 = vunpack.c.h.b16 %v316
        %v541 = vunpack.c.l.b16 %v317
        %v542 = vunpack.c.h.b16 %v317
        %v543 = vunpack.c.l.b16 %v318
        %v544 = vunpack.c.h.b16 %v318
        %v545 = vunpack.c.l.b16 %v319
        %v546 = vunpack.c.h.b16 %v319
        %v547 = vunpack.c.l.b16 %v320
        %v548 = vunpack.c.h.b16 %v320
        %v549 = vunpack.c.l.b16 %v321
        %v550 = vunpack.c.h.b16 %v321
        %v551 = vunpack.c.l.b16 %v322
        %v552 = vunpack.c.h.b16 %v322
        %v553 = vunpack.c.l.b16 %v323
        %v554 = vunpack.c.h.b16 %v323
        %v555 = vunpack.c.l.b16 %v324
        %v556 = vunpack.c.h.b16 %v324
        %v557 = vunpack.c.l.b16 %v325
        %v558 = vunpack.c.h.b16 %v325
        %v559 = vunpack.c.l.b16 %v326
        %v560 = vunpack.c.h.b16 %v326
        %v561 = vunpack.c.l.b16 %v327
        %v562 = vunpack.c.h.b16 %v327
        %v563 = vunpack.c.l.b16 %v328
        %v564 = vunpack.c.h.b16 %v328
        %v565 = vunpack.c.l.b16 %v329
        %v566 = vunpack.c.h.b16 %v329
        %v567 = vunpack.c.l.b16 %v330
        %v568 = vunpack.c.h.b16 %v330
        %v569 = vunpack.c.l.b16 %v331
        %v570 = vunpack.c.h.b16 %v331
        %v571 = vunpack.c.l.b16 %v332
        %v572 = vunpack.c.h.b16 %v332
        %v573 = vpack.c.b16 %v453, %v445
        %v574 = vpack.c.b16 %v454, %v446
        %v575 = vpack.c.b16 %v455, %v447
        %v576 = vpack.c.b16 %v456, %v448
        %v577 = vpack.c.b16 %v457, %v449
        %v578 = vpack.c.b16 %v458, %v450
        %v579 = vpack.c.b16 %v459, %v451
        %v580 = vpack.c.b16 %v460, %v452
        %v581 = vpack.c.b16 %v469, %v461
        %v582 = vpack.c.b16 %v470, %v462
        %v583 = vpack.c.b16 %v471, %v463
        %v584 = vpack.c.b16 %v472, %v464
        %v585 = vpack.c.b16 %v473, %v465
        %v586 = vpack.c.b16 %v474, %v466
        %v587 = vpack.c.b16 %v475, %v467
        %v588 = vpack.c.b16 %v476, %v468
        %v589 = vpack.c.b16 %v485, %v477
        %v590 = vpack.c.b16 %v486, %v478
        %v591 = vpack.c.b16 %v487, %v479
        %v592 = vpack.c.b16 %v488, %v480
        %v593 = vpack.c.b16 %v489, %v481
        %v594 = vpack.c.b16 %v490, %v482
        %v595 = vpack.c.b16 %v491, %v483
        %v596 = vpack.c.b16 %v492, %v484
        %v597 = vpack.c.b16 %v501, %v493
        %v598 = vpack.c.b16 %v502, %v494
        %v599 = vpack.c.b16 %v503, %v495
        %v600 = vpack.c.b16 %v504, %v496
        %v601 = vpack.c.b16 %v505, %v497
        %v602 = vpack.c.b16 %v506, %v498
        %v603 = vpack.c.b16 %v507, %v499
        %v604 = vpack.c.b16 %v508, %v500
        %v605 = vpack.c.b16 %v517, %v509
        %v606 = vpack.c.b16 %v518, %v510
        %v607 = vpack.c.b16 %v519, %v511
        %v608 = vpack.c.b16 %v520, %v512
        %v609 = vpack.c.b16 %v521, %v513
        %v610 = vpack.c.b16 %v522, %v514
        %v611 = vpack.c.b16 %v523, %v515
        %v612 = vpack.c.b16 %v524, %v516
        %v613 = vpack.c.b16 %v533, %v525
        %v614 = vpack.c.b16 %v534, %v526
        %v615 = vpack.c.b16 %v535, %v527
        %v616 = vpack.c.b16 %v536, %v528
        %v617 = vpack.c.b16 %v537, %v529
        %v618 = vpack.c.b16 %v538, %v530
        %v619 = vpack.c.b16 %v539, %v531
        %v620 = vpack.c.b16 %v540, %v532
        %v621 = vpack.c.b16 %v549, %v541
        %v622 = vpack.c.b16 %v550, %v542
        %v623 = vpack.c.b16 %v551, %v543
        %v624 = vpack.c.b16 %v552, %v544
        %v625 = vpack.c.b16 %v553, %v545
        %v626 = vpack.c.b16 %v554, %v546
        %v627 = vpack.c.b16 %v555, %v547
        %v628 = vpack.c.b16 %v556, %v548
        %v629 = vpack.c.b16 %v565, %v557
        %v630 = vpack.c.b16 %v566, %v558
        %v631 = vpack.c.b16 %v567, %v559
        %v632 = vpack.c.b16 %v568, %v560
        %v633 = vpack.c.b16 %v569, %v561
        %v634 = vpack.c.b16 %v570, %v562
        %v635 = vpack.c.b16 %v571, %v563
        %v636 = vpack.c.b16 %v572, %v564
        %701 = vmatprep.subr.bf16.mxu0 %v574
        %702 = vmatpush1.bf16.msra.mxu0 %v573
        %703 = vmatprep.subr.bf16.mxu0 %v582
        %704 = vmatpush1.bf16.msra.mxu0 %v581
        %705 = vmatprep.subr.bf16.mxu0 %v590
        %706 = vmatpush1.bf16.msra.mxu0 %v589
        %707 = vmatprep.subr.bf16.mxu0 %v598
        %708 = vmatpush1.bf16.msra.mxu0 %v597
        %709 = vmatprep.subr.bf16.mxu0 %v606
        %710 = vmatpush1.bf16.msra.mxu0 %v605
        %711 = vmatprep.subr.bf16.mxu0 %v614
        %712 = vmatpush1.bf16.msra.mxu0 %v613
        %713 = vmatprep.subr.bf16.mxu0 %v622
        %714 = vmatpush1.bf16.msra.mxu0 %v621
        %715 = vmatprep.subr.bf16.mxu0 %v630
        %716 = vmatpush1.bf16.msra.mxu0 %v629
        %717 = vmatprep.subr.bf16.mxu0 0
        %718 = vmatpush1.bf16.msra.mxu0 0
        %719 = vmatprep.subr.bf16.mxu0 0
        %720 = vmatpush1.bf16.msra.mxu0 0
        %721 = vmatprep.subr.bf16.mxu0 0
        %722 = vmatpush1.bf16.msra.mxu0 0
        %723 = vmatprep.subr.bf16.mxu0 0
        %724 = vmatpush1.bf16.msra.mxu0 0
        %725 = vmatprep.subr.bf16.mxu0 0
        %726 = vmatpush1.bf16.msra.mxu0 0
        %727 = vmatprep.subr.bf16.mxu0 0
        %728 = vmatpush1.bf16.msra.mxu0 0
        %729 = vmatprep.subr.bf16.mxu0 0
        %730 = vmatpush1.bf16.msra.mxu0 0
        %731 = vmatprep.subr.bf16.mxu0 0
        %732 = vmatpush1.bf16.msra.mxu0 0
        %733 = vmatprep.mubr.bf16.mxu0 0
        %734 = vmatmul.mubr.bf16.gmra.mrb[0].mxu0 %v379
        %v735 = vpop.f32.mrb[0].mxu0
        %v736 = vadd.f32 %v338, %v735
        %v737 = vpop.f32.mrb[0].mxu0
        %v738 = vadd.f32 %v342, %v737
        %v739 = vpop.f32.mrb[0].mxu0
        %v740 = vadd.f32 %v338, %v739
        %v741 = vpop.f32.mrb[0].mxu0
        %v742 = vadd.f32 %v342, %v741
        %743 = vdwg.mxu0
        %744 = vmatprep.subr.bf16.mxu0 %v576
        %745 = vmatpush1.bf16.msra.mxu0 %v575
        %746 = vmatprep.subr.bf16.mxu0 %v584
        %747 = vmatpush1.bf16.msra.mxu0 %v583
        %748 = vmatprep.subr.bf16.mxu0 %v592
        %749 = vmatpush1.bf16.msra.mxu0 %v591
        %750 = vmatprep.subr.bf16.mxu0 %v600
        %751 = vmatpush1.bf16.msra.mxu0 %v599
        %752 = vmatprep.subr.bf16.mxu0 %v608
        %753 = vmatpush1.bf16.msra.mxu0 %v607
        %754 = vmatprep.subr.bf16.mxu0 %v616
        %755 = vmatpush1.bf16.msra.mxu0 %v615
        %756 = vmatprep.subr.bf16.mxu0 %v624
        %757 = vmatpush1.bf16.msra.mxu0 %v623
        %758 = vmatprep.subr.bf16.mxu0 %v632
        %759 = vmatpush1.bf16.msra.mxu0 %v631
        %760 = vmatprep.subr.bf16.mxu0 0
        %761 = vmatpush1.bf16.msra.mxu0 0
        %762 = vmatprep.subr.bf16.mxu0 0
        %763 = vmatpush1.bf16.msra.mxu0 0
        %764 = vmatprep.subr.bf16.mxu0 0
        %765 = vmatpush1.bf16.msra.mxu0 0
        %766 = vmatprep.subr.bf16.mxu0 0
        %767 = vmatpush1.bf16.msra.mxu0 0
        %768 = vmatprep.subr.bf16.mxu0 0
        %769 = vmatpush1.bf16.msra.mxu0 0
        %770 = vmatprep.subr.bf16.mxu0 0
        %771 = vmatpush1.bf16.msra.mxu0 0
        %772 = vmatprep.subr.bf16.mxu0 0
        %773 = vmatpush1.bf16.msra.mxu0 0
        %774 = vmatprep.subr.bf16.mxu0 0
        %775 = vmatpush1.bf16.msra.mxu0 0
        %776 = vmatprep.mubr.bf16.mxu0 0
        %777 = vmatmul.mubr.bf16.gmra.mrb[0].mxu0 %v379
        %v778 = vpop.f32.mrb[0].mxu0
        %v779 = vadd.f32 %v346, %v778
        %v780 = vpop.f32.mrb[0].mxu0
        %v781 = vadd.f32 %v350, %v780
        %v782 = vpop.f32.mrb[0].mxu0
        %v783 = vadd.f32 %v346, %v782
        %v784 = vpop.f32.mrb[0].mxu0
        %v785 = vadd.f32 %v350, %v784
        %786 = vdwg.mxu0
        %787 = vmatprep.subr.bf16.mxu0 %v578
        %788 = vmatpush1.bf16.msra.mxu0 %v577
        %789 = vmatprep.subr.bf16.mxu0 %v586
        %790 = vmatpush1.bf16.msra.mxu0 %v585
        %791 = vmatprep.subr.bf16.mxu0 %v594
        %792 = vmatpush1.bf16.msra.mxu0 %v593
        %793 = vmatprep.subr.bf16.mxu0 %v602
        %794 = vmatpush1.bf16.msra.mxu0 %v601
        %795 = vmatprep.subr.bf16.mxu0 %v610
        %796 = vmatpush1.bf16.msra.mxu0 %v609
        %797 = vmatprep.subr.bf16.mxu0 %v618
        %798 = vmatpush1.bf16.msra.mxu0 %v617
        %799 = vmatprep.subr.bf16.mxu0 %v626
        %800 = vmatpush1.bf16.msra.mxu0 %v625
        %801 = vmatprep.subr.bf16.mxu0 %v634
        %802 = vmatpush1.bf16.msra.mxu0 %v633
        %803 = vmatprep.subr.bf16.mxu0 0
        %804 = vmatpush1.bf16.msra.mxu0 0
        %805 = vmatprep.subr.bf16.mxu0 0
        %806 = vmatpush1.bf16.msra.mxu0 0
        %807 = vmatprep.subr.bf16.mxu0 0
        %808 = vmatpush1.bf16.msra.mxu0 0
        %809 = vmatprep.subr.bf16.mxu0 0
        %810 = vmatpush1.bf16.msra.mxu0 0
        %811 = vmatprep.subr.bf16.mxu0 0
        %812 = vmatpush1.bf16.msra.mxu0 0
        %813 = vmatprep.subr.bf16.mxu0 0
        %814 = vmatpush1.bf16.msra.mxu0 0
        %815 = vmatprep.subr.bf16.mxu0 0
        %816 = vmatpush1.bf16.msra.mxu0 0
        %817 = vmatprep.subr.bf16.mxu0 0
        %818 = vmatpush1.bf16.msra.mxu0 0
        %819 = vmatprep.mubr.bf16.mxu0 0
        %820 = vmatmul.mubr.bf16.gmra.mrb[0].mxu0 %v379
        %v821 = vpop.f32.mrb[0].mxu0
        %v822 = vadd.f32 %v354, %v821
        %v823 = vpop.f32.mrb[0].mxu0
        %v824 = vadd.f32 %v358, %v823
        %v825 = vpop.f32.mrb[0].mxu0
        %v826 = vadd.f32 %v354, %v825
        %v827 = vpop.f32.mrb[0].mxu0
        %v828 = vadd.f32 %v358, %v827
        %829 = vdwg.mxu0
        %830 = vmatprep.subr.bf16.mxu0 %v580
        %831 = vmatpush1.bf16.msra.mxu0 %v579
        %832 = vmatprep.subr.bf16.mxu0 %v588
        %833 = vmatpush1.bf16.msra.mxu0 %v587
        %834 = vmatprep.subr.bf16.mxu0 %v596
        %835 = vmatpush1.bf16.msra.mxu0 %v595
        %836 = vmatprep.subr.bf16.mxu0 %v604
        %837 = vmatpush1.bf16.msra.mxu0 %v603
        %838 = vmatprep.subr.bf16.mxu0 %v612
        %839 = vmatpush1.bf16.msra.mxu0 %v611
        %840 = vmatprep.subr.bf16.mxu0 %v620
        %841 = vmatpush1.bf16.msra.mxu0 %v619
        %842 = vmatprep.subr.bf16.mxu0 %v628
        %843 = vmatpush1.bf16.msra.mxu0 %v627
        %844 = vmatprep.subr.bf16.mxu0 %v636
        %845 = vmatpush1.bf16.msra.mxu0 %v635
        %846 = vmatprep.subr.bf16.mxu0 0
        %847 = vmatpush1.bf16.msra.mxu0 0
        %848 = vmatprep.subr.bf16.mxu0 0
        %849 = vmatpush1.bf16.msra.mxu0 0
        %850 = vmatprep.subr.bf16.mxu0 0
        %851 = vmatpush1.bf16.msra.mxu0 0
        %852 = vmatprep.subr.bf16.mxu0 0
        %853 = vmatpush1.bf16.msra.mxu0 0
        %854 = vmatprep.subr.bf16.mxu0 0
        %855 = vmatpush1.bf16.msra.mxu0 0
        %856 = vmatprep.subr.bf16.mxu0 0
        %857 = vmatpush1.bf16.msra.mxu0 0
        %858 = vmatprep.subr.bf16.mxu0 0
        %859 = vmatpush1.bf16.msra.mxu0 0
        %860 = vmatprep.subr.bf16.mxu0 0
        %861 = vmatpush1.bf16.msra.mxu0 0
        %862 = vmatprep.mubr.bf16.mxu0 0
        %863 = vmatmul.mubr.bf16.gmra.mrb[0].mxu0 %v379
        %v864 = vpop.f32.mrb[0].mxu0
        %v865 = vadd.f32 %v362, %v864
        %v866 = vpop.f32.mrb[0].mxu0
        %v867 = vadd.f32 %v366, %v866
        %v868 = vpop.f32.mrb[0].mxu0
        %v869 = vadd.f32 %v362, %v868
        %v870 = vpop.f32.mrb[0].mxu0
        %v871 = vadd.f32 %v366, %v870
        %872 = vdwg.mxu0
        %873 = vst [vmem:[%s260] sm:$0xff] %v736
        %874 = vst [vmem:[%s260 + $0x8] sm:$0xff] %v738
        %875 = vst [vmem:[%s260 + $0x10] sm:$0xff] %v779
        %876 = vst [vmem:[%s260 + $0x18] sm:$0xff] %v781
        %877 = vst [vmem:[%s260 + $0x20] sm:$0xff] %v822
        %878 = vst [vmem:[%s260 + $0x28] sm:$0xff] %v824
        %879 = vst [vmem:[%s260 + $0x30] sm:$0xff] %v865
        %880 = vst [vmem:[%s260 + $0x38] sm:$0xff] %v867
        %881 = vst [vmem:[%s260 + $0x40] sm:$0xff] %v740
        %882 = vst [vmem:[%s260 + $0x48] sm:$0xff] %v742
        %883 = vst [vmem:[%s260 + $0x50] sm:$0xff] %v783
        %884 = vst [vmem:[%s260 + $0x58] sm:$0xff] %v785
        %885 = vst [vmem:[%s260 + $0x60] sm:$0xff] %v826
        %886 = vst [vmem:[%s260 + $0x68] sm:$0xff] %v828
        %887 = vst [vmem:[%s260 + $0x70] sm:$0xff] %v869
        %888 = vst [vmem:[%s260 + $0x78] sm:$0xff] %v871
        %s889 = sand.u32 %s121, 1
        %s890 = scalar_lea.sflag [#allocation4], %s889
        %s891 = sand.u32 %s121, 1
        %s892 = smul.addr %s891, 128
        %s893 = scalar_lea.vmem [#allocation8], %s892
        // Predicated region
        $region45: #{tpu_custom_call.1} parent=31 // pred_check
          %p894 = pneg %p131
        $region46: #{tpu_custom_call.1} parent=31 // pred_check_branch
          %896 = sbr.rel (%p894) target = $region48
        $region47: #{tpu_custom_call.1} parent=31 // pred_region
          %s897 = smul.u32 2, %s25
          %s898 = smul.u32 8, %s26
          %s900 = ssub.s32 2048, 2048
          %901 = vsyncadd %s890, %s900
          %s902 = smul.addr %s897, 16
          %s903 = sadd.s32 %s898, %s902
          %s904 = smul.addr %s903, 128
          %s905 = scalar_lea.hbm %s3, %s904
          %s906 = sshll.u32 %s893, 4
          %s907 = int_to_ptr.vmem [resolvable:$true] %s906
          %912 = dma.vmem_to_hbm [thread:$0]  %s907, 2048, %s905, %s890, 1024, 2048, 64
        $region48: #{tpu_custom_call.1} parent=31 // pred_fallthru
          _
      $region32: #{tpu_custom_call.1} parent=5 // pred_fallthru
        _
      %p913 = scmp.le.s32.totalorder 2, %s16
      // Predicated region
      $region49: #{tpu_custom_call.1} parent=5 // pred_check
        %p914 = pneg %p913
      $region50: #{tpu_custom_call.1} parent=5 // pred_check_branch
        %916 = sbr.rel (%p914) target = $region52
      $region51: #{tpu_custom_call.1} parent=5 // pred_region
        %s917 = ssub.s32 %s16, 2
        // Predicated region
        $region53: #{tpu_custom_call.1} parent=51 // pred_check
          %p918 = pneg %p137
        $region54: #{tpu_custom_call.1} parent=51 // pred_check_branch
          %920 = sbr.rel (%p918) target = $region56
        $region55: #{tpu_custom_call.1} parent=51 // pred_region
          %s921 = sand.u32 %s122, 1
          %s922 = scalar_lea.sflag [#allocation4], %s921
          %s923 = sand.u32 %s122, 1
          %s924 = smul.addr %s923, 128
          %s925 = scalar_lea.vmem [#allocation8], %s924
          %926 = dma.done %s922, 2048
        $region56: #{tpu_custom_call.1} parent=51 // pred_fallthru
          _
      $region52: #{tpu_custom_call.1} parent=5 // pred_fallthru
        _
    $region6: #{tpu_custom_call.1} parent=1 // loop_footer
      %s20 = sadd.s32 1, %s16
    $region7: #{tpu_custom_call.1} parent=1 // loop_footer_branch
      %15 = sbr.rel target = $region3
    $region8: #{tpu_custom_call.1} parent=1 // loop_exit
      _
    %927 = vsyncpa [#allocation3], 1
    %s928 = scalar_lea.sflag [#allocation3], 1
    %929 = vsyncpa %s928, 1
    %930 = vsyncpa [#allocation6], 1
    %s931 = scalar_lea.sflag [#allocation6], 1
    %932 = vsyncpa %s931, 1
    %933 = vsyncpa [#allocation4], 1
    %s934 = scalar_lea.sflag [#allocation4], 1
    %935 = vsyncpa %s934, 1

</llo_original>
